<compile_context>
chip_gen: v7x
topology: tpu7x:2x2x1
jax: 0.10.0
libtpu: 0.0.40
codegen_flags: <defaults>
</compile_context>

<pallas_src>
import jax
import jax.numpy as jnp
from jax.experimental import pallas as pl
from jax.experimental.pallas import tpu as pltpu

BN_EPS = 1e-5
LANE = 128
ROW_ALIGN = 16          # bf16 operands pack 16 sublanes per vreg
STATS_ROWS = 8          # pad per-tile stats block to a full 8-sublane tile


def _round_up(x, m):
    return (x + m - 1) // m * m


def _chip_vmem_capacity():
    """Physical VMEM per core, with a conservative fallback."""
    try:
        info = pltpu.get_tpu_info()
        cap = getattr(info, "vmem_capacity_bytes", None)
        if cap:
            return int(cap)
    except Exception:
        pass
    return 128 * 1024 * 1024


_VMEM_CAP = _chip_vmem_capacity()
# ~half of physical VMEM as scoped limit: v7x (64 MiB) -> 32 MiB, v5e/v6e (128 MiB) -> 64 MiB.
VMEM_LIMIT = int(min(max(_VMEM_CAP // 2, 32 * 1024 * 1024), 96 * 1024 * 1024))
# Matmul-pass M tile: larger on 128 MiB-VMEM chips, smaller on v7x.
MAX_TILE_M = 1024 if _VMEM_CAP >= 100 * 1024 * 1024 else 512
# Elementwise pass-2 tiles can be much taller (pure HBM-bound).
MAX_EW_ROWS = 4096 if _VMEM_CAP >= 100 * 1024 * 1024 else 2048


def _pad2d(a, rows, cols):
    r, c = a.shape
    return jnp.pad(a, ((0, rows - r), (0, cols - c)))


def _pad1d(a, n):
    return jnp.pad(a, (0, n - a.shape[0]))


def _compiler_params():
    return pltpu.CompilerParams(
        dimension_semantics=("parallel",),
        vmem_limit_bytes=VMEM_LIMIT,
    )


def _matmul_tile_m(m):
    # Guarantee >= 2 M tiles so ("parallel",) shards across both TensorCores on v7x.
    half = _round_up(max((m + 1) // 2, ROW_ALIGN), ROW_ALIGN)
    return max(ROW_ALIGN, min(MAX_TILE_M, half))


def _pass2_tile(mp, tile_m):
    """Taller tile for the HBM-bound elementwise pass, keeping >= 2 tiles for megacore."""
    t = tile_m
    while (t * 2 <= MAX_EW_ROWS) and (mp % (t * 2) == 0) and (mp // (t * 2) >= 2):
        t *= 2
    return t


# ---------------- pass 1: bf16 matmul (+ optional shortcut matmul) + partial stats ----
def _matmul_stats_kernel(p_ref, w_ref, out_ref, stats_ref):
    acc = jnp.dot(p_ref[...], w_ref[...], preferred_element_type=jnp.float32)
    out_ref[...] = acc.astype(out_ref.dtype)           # bf16 store of the conv output
    c = acc.shape[1]
    rows = jnp.concatenate(
        [jnp.sum(acc, axis=0, keepdims=True),
         jnp.sum(acc * acc, axis=0, keepdims=True),
         jnp.zeros((STATS_ROWS - 2, c), jnp.float32)], axis=0)
    stats_ref[...] = rows.reshape(1, STATS_ROWS, c)


def _matmul_stats_sc_kernel(p_ref, psc_ref, w_ref, wsc_ref, out_ref, stats_ref):
    acc = jnp.dot(p_ref[...], w_ref[...], preferred_element_type=jnp.float32)
    acc_sc = jnp.dot(psc_ref[...], wsc_ref[...], preferred_element_type=jnp.float32)
    out_ref[...] = acc.astype(out_ref.dtype)
    c = acc.shape[1]
    rows = jnp.concatenate(
        [jnp.sum(acc, axis=0, keepdims=True),
         jnp.sum(acc * acc, axis=0, keepdims=True),
         jnp.sum(acc_sc, axis=0, keepdims=True),
         jnp.sum(acc_sc * acc_sc, axis=0, keepdims=True),
         jnp.zeros((STATS_ROWS - 4, c), jnp.float32)], axis=0)
    stats_ref[...] = rows.reshape(1, STATS_ROWS, c)


# ---------------- pass 2: scale/bias (+ residual) + ReLU -------------------------------
def _bn_relu_kernel(conv_ref, scale_ref, bias_ref, out_ref):
    y = conv_ref[...].astype(jnp.float32) * scale_ref[...] + bias_ref[...]
    out_ref[...] = jnp.maximum(y, 0.0).astype(out_ref.dtype)


def _bn_add_relu_kernel(conv_ref, res_ref, scale_ref, bias_ref, out_ref):
    y = (conv_ref[...].astype(jnp.float32) * scale_ref[...] + bias_ref[...]
         + res_ref[...].astype(jnp.float32))
    out_ref[...] = jnp.maximum(y, 0.0).astype(out_ref.dtype)


def _bn_scconv_add_relu_kernel(conv_ref, psc_ref, wsc_ref, scale_ref, bias_ref,
                               scale_sc_ref, bias_sc_ref, out_ref):
    sc = jnp.dot(psc_ref[...], wsc_ref[...], preferred_element_type=jnp.float32)
    y = (conv_ref[...].astype(jnp.float32) * scale_ref[...] + bias_ref[...]
         + sc * scale_sc_ref[...] + bias_sc_ref[...])
    out_ref[...] = jnp.maximum(y, 0.0).astype(out_ref.dtype)


# ---------------- pallas_call wrappers --------------------------------------------------
def _conv_matmul_stats(patches, w, tile_m):
    mp, kp = patches.shape
    cp = w.shape[1]
    n_tiles = mp // tile_m
    return pl.pallas_call(
        _matmul_stats_kernel,
        out_shape=(jax.ShapeDtypeStruct((mp, cp), jnp.bfloat16),
                   jax.ShapeDtypeStruct((n_tiles, STATS_ROWS, cp), jnp.float32)),
        grid=(n_tiles,),
        in_specs=[pl.BlockSpec((tile_m, kp), lambda i: (i, 0)),
                  pl.BlockSpec((kp, cp), lambda i: (0, 0))],      # weight resident
        out_specs=(pl.BlockSpec((tile_m, cp), lambda i: (i, 0)),
                   pl.BlockSpec((1, STATS_ROWS, cp), lambda i: (i, 0, 0))),
        compiler_params=_compiler_params(),
    )(patches, w)


def _conv_matmul_stats_sc(patches, patches_sc, w, w_sc, tile_m):
    mp, kp = patches.shape
    ksp = patches_sc.shape[1]
    cp = w.shape[1]
    n_tiles = mp // tile_m
    return pl.pallas_call(
        _matmul_stats_sc_kernel,
        out_shape=(jax.ShapeDtypeStruct((mp, cp), jnp.bfloat16),
                   jax.ShapeDtypeStruct((n_tiles, STATS_ROWS, cp), jnp.float32)),
        grid=(n_tiles,),
        in_specs=[pl.BlockSpec((tile_m, kp), lambda i: (i, 0)),
                  pl.BlockSpec((tile_m, ksp), lambda i: (i, 0)),
                  pl.BlockSpec((kp, cp), lambda i: (0, 0)),
                  pl.BlockSpec((ksp, cp), lambda i: (0, 0))],
        out_specs=(pl.BlockSpec((tile_m, cp), lambda i: (i, 0)),
                   pl.BlockSpec((1, STATS_ROWS, cp), lambda i: (i, 0, 0))),
        compiler_params=_compiler_params(),
    )(patches, patches_sc, w, w_sc)


def _bn_relu_apply(conv_raw, scale, bias, tile_m, out_dtype):
    mp, cp = conv_raw.shape
    n_tiles = mp // tile_m
    return pl.pallas_call(
        _bn_relu_kernel,
        out_shape=jax.ShapeDtypeStruct((mp, cp), out_dtype),
        grid=(n_tiles,),
        in_specs=[pl.BlockSpec((tile_m, cp), lambda i: (i, 0)),
                  pl.BlockSpec((1, cp), lambda i: (0, 0)),
                  pl.BlockSpec((1, cp), lambda i: (0, 0))],
        out_specs=pl.BlockSpec((tile_m, cp), lambda i: (i, 0)),
        compiler_params=_compiler_params(),
    )(conv_raw, scale, bias)


def _bn_add_relu_apply(conv_raw, res, scale, bias, tile_m, out_dtype):
    mp, cp = conv_raw.shape
    n_tiles = mp // tile_m
    return pl.pallas_call(
        _bn_add_relu_kernel,
        out_shape=jax.ShapeDtypeStruct((mp, cp), out_dtype),
        grid=(n_tiles,),
        in_specs=[pl.BlockSpec((tile_m, cp), lambda i: (i, 0)),
                  pl.BlockSpec((tile_m, cp), lambda i: (i, 0)),
                  pl.BlockSpec((1, cp), lambda i: (0, 0)),
                  pl.BlockSpec((1, cp), lambda i: (0, 0))],
        out_specs=pl.BlockSpec((tile_m, cp), lambda i: (i, 0)),
        compiler_params=_compiler_params(),
    )(conv_raw, res, scale, bias)


def _bn_scconv_add_relu_apply(conv_raw, patches_sc, w_sc, scale, bias,
                              scale_sc, bias_sc, tile_m, out_dtype):
    mp, cp = conv_raw.shape
    ksp = patches_sc.shape[1]
    n_tiles = mp // tile_m
    return pl.pallas_call(
        _bn_scconv_add_relu_kernel,
        out_shape=jax.ShapeDtypeStruct((mp, cp), out_dtype),
        grid=(n_tiles,),
        in_specs=[pl.BlockSpec((tile_m, cp), lambda i: (i, 0)),
                  pl.BlockSpec((tile_m, ksp), lambda i: (i, 0)),
                  pl.BlockSpec((ksp, cp), lambda i: (0, 0)),
                  pl.BlockSpec((1, cp), lambda i: (0, 0)),
                  pl.BlockSpec((1, cp), lambda i: (0, 0)),
                  pl.BlockSpec((1, cp), lambda i: (0, 0)),
                  pl.BlockSpec((1, cp), lambda i: (0, 0))],
        out_specs=pl.BlockSpec((tile_m, cp), lambda i: (i, 0)),
        compiler_params=_compiler_params(),
    )(conv_raw, patches_sc, w_sc, scale, bias, scale_sc, bias_sc)


# ------------------------------- JAX glue -----------------------------------------------
def _bn_scale_bias(ch_sum, ch_sumsq, count, gamma_p, beta_p, eps=BN_EPS):
    """Exact training-mode BN (batch mean / biased var) folded into scale/bias."""
    mean = ch_sum / count
    var = jnp.maximum(ch_sumsq / count - mean * mean, 0.0)
    # TODO(synk): E[x^2]-E[x]^2 in f32 can cancel for very-large-mean channels; a
    # Welford / Chan merge of per-tile centered partials would be safer at scale.
    inv = jax.lax.rsqrt(var + eps)
    scale = gamma_p * inv
    bias = beta_p - mean * scale
    return (scale.reshape(1, -1).astype(jnp.float32),
            bias.reshape(1, -1).astype(jnp.float32))


def _conv_out_hw(h, w, ksize, stride, pad):
    return (h + 2 * pad - ksize) // stride + 1, (w + 2 * pad - ksize) // stride + 1


def im2col_padded(x_nhwc, ksize, stride, pad, rows_to, cols_to):
    """bf16 im2col with row/col zero-padding folded into a single patch materialization.

    Returns a (rows_to, cols_to) bf16 matrix; true rows are the first N*Ho*Wo.
    """
    n, h, w, c = x_nhwc.shape
    xb = x_nhwc.astype(jnp.bfloat16)
    xp = jnp.pad(xb, ((0, 0), (pad, pad), (pad, pad), (0, 0)))
    ho, wo = _conv_out_hw(h, w, ksize, stride, pad)
    cols = []
    for ky in range(ksize):
        for kx in range(ksize):
            cols.append(xp[:, ky:ky + stride * ho:stride, kx:kx + stride * wo:stride, :])
    k = ksize * ksize * c
    if cols_to > k:
        cols.append(jnp.zeros((n, ho, wo, cols_to - k), jnp.bfloat16))
    p = jnp.concatenate(cols, axis=-1).reshape(n * ho * wo, cols_to)
    m = n * ho * wo
    if rows_to > m:
        p = jnp.pad(p, ((0, rows_to - m), (0, 0)))
    return p


def oihw_to_mat(w_oihw):
    """PyTorch conv weight (Cout, Cin, kH, kW) -> (kH*kW*Cin, Cout) matching im2col."""
    cout, cin, kh, kw = w_oihw.shape
    return jnp.transpose(w_oihw, (2, 3, 1, 0)).reshape(kh * kw * cin, cout)


def init_basic_block_params(key, in_planes, planes):
    ks = jax.random.split(key, 3)
    return {
        "conv1_w": 0.1 * jax.random.normal(ks[0], (planes, in_planes, 3, 3), jnp.float32),
        "conv2_w": 0.1 * jax.random.normal(ks[1], (planes, planes, 3, 3), jnp.float32),
        "conv3_w": 0.1 * jax.random.normal(ks[2], (planes, in_planes, 1, 1), jnp.float32),
        "bn1_g": 1.0 + 0.1 * jnp.arange(planes, dtype=jnp.float32),
        "bn1_b": 0.05 * jnp.arange(planes, dtype=jnp.float32),
        "bn2_g": 1.0 - 0.05 * jnp.arange(planes, dtype=jnp.float32),
        "bn2_b": -0.02 * jnp.arange(planes, dtype=jnp.float32),
        "bn_sc_g": 1.0 + 0.03 * jnp.arange(planes, dtype=jnp.float32),
        "bn_sc_b": 0.01 * jnp.arange(planes, dtype=jnp.float32),
    }


def basic_block_forward(x_nchw, params, stride):
    """BasicBlock forward (operator='conv'), training-mode BN. NCHW in/out (f32)."""
    # TODO(synk): running-mean/var buffer updates (a training side effect) are not modeled.
    x = jnp.transpose(x_nchw, (0, 2, 3, 1))                       # -> NHWC
    n, h, w, in_planes = x.shape
    planes = params["conv1_w"].shape[0]
    cp = _round_up(planes, LANE)                                  # lane-dense channels
    # TODO(synk): pad to 256 lanes (or fuse two 128-wide N groups) on v6e/v7x to fill the
    # 2x256x256 MXU; kept at 128 since test channel counts are tiny.

    ho, wo = _conv_out_hw(h, w, 3, stride, 1)
    m = n * ho * wo
    tile_m = _matmul_tile_m(m)                                    # MXU pass tile (>=2 tiles)
    mp = _round_up(m, tile_m)
    tile_ew = _pass2_tile(mp, tile_m)                             # taller HBM-bound pass tile

    # ---- conv1(3x3, stride) + bn1 + relu ----------------------------------------------
    k1p = _round_up(9 * in_planes, LANE)
    p1p = im2col_padded(x, 3, stride, 1, mp, k1p)                 # single bf16 patch build
    w1p = _pad2d(oihw_to_mat(params["conv1_w"]), k1p, cp).astype(jnp.bfloat16)
    conv1_raw, st1 = _conv_matmul_stats(p1p, w1p, tile_m)         # conv1_raw stored in bf16
    st1 = jnp.sum(st1, axis=0)                                    # exact stats across tiles
    scale1, bias1 = _bn_scale_bias(st1[0], st1[1], m,
                                   _pad1d(params["bn1_g"], cp),
                                   _pad1d(params["bn1_b"], cp))
    # out1 only feeds the bf16 conv2 matmul -> emit it directly in bf16
    out1 = _bn_relu_apply(conv1_raw, scale1, bias1, tile_ew, jnp.bfloat16)
    out1_nhwc = out1[:m, :planes].reshape(n, ho, wo, planes)

    # ---- conv2(3x3, 1) + bn2 [+ fused 1x1-shortcut conv + bn_sc] + relu ----------------
    # TODO(synk): the 3x3 im2col patches are still materialized once in HBM (bf16); an
    # in-kernel halo gather (pl.ANY + make_async_copy) or a 9-tap "arbitrary" K grid axis
    # with a VMEM f32 accumulator would remove the remaining ~9x patch-read inflation.
    k2p = _round_up(9 * planes, LANE)
    p2p = im2col_padded(out1_nhwc, 3, 1, 1, mp, k2p)
    w2p = _pad2d(oihw_to_mat(params["conv2_w"]), k2p, cp).astype(jnp.bfloat16)
    g2 = _pad1d(params["bn2_g"], cp)
    b2 = _pad1d(params["bn2_b"], cp)

    if stride != 1 or in_planes != planes:
        # projection shortcut: conv3(1x1, stride) + bn_sc, fused into the conv2 kernels
        k3p = _round_up(in_planes, LANE)
        p3p = im2col_padded(x, 1, stride, 0, mp, k3p)
        w3p = _pad2d(oihw_to_mat(params["conv3_w"]), k3p, cp).astype(jnp.bfloat16)

        conv2_raw, st2 = _conv_matmul_stats_sc(p2p, p3p, w2p, w3p, tile_m)
        st2 = jnp.sum(st2, axis=0)
        scale2, bias2 = _bn_scale_bias(st2[0], st2[1], m, g2, b2)
        scale_sc, bias_sc = _bn_scale_bias(st2[2], st2[3], m,
                                           _pad1d(params["bn_sc_g"], cp),
                                           _pad1d(params["bn_sc_b"], cp))
        out2 = _bn_scconv_add_relu_apply(conv2_raw, p3p, w3p, scale2, bias2,
                                         scale_sc, bias_sc, tile_ew, jnp.float32)
    else:
        # identity shortcut: residual fed as a single bf16 padded view of x
        res = _pad2d(x.reshape(m, planes).astype(jnp.bfloat16), mp, cp)
        conv2_raw, st2 = _conv_matmul_stats(p2p, w2p, tile_m)
        st2 = jnp.sum(st2, axis=0)
        scale2, bias2 = _bn_scale_bias(st2[0], st2[1], m, g2, b2)
        out2 = _bn_add_relu_apply(conv2_raw, res, scale2, bias2, tile_ew, jnp.float32)

    out_nhwc = out2[:m, :planes].reshape(n, ho, wo, planes)
    return jnp.transpose(out_nhwc, (0, 3, 1, 2))                  # -> NCHW


# ------------------------------ pure-JAX reference ---------------------------------------
def _ref_forward(x_nchw, params, stride):
    x = jnp.transpose(x_nchw, (0, 2, 3, 1))

    def conv(z, w_oihw, s, pad):
        w = jnp.transpose(w_oihw, (2, 3, 1, 0))                   # HWIO
        return jax.lax.conv_general_dilated(
            z, w, (s, s), ((pad, pad), (pad, pad)),
            dimension_numbers=("NHWC", "HWIO", "NHWC"))

    def bn(y, g, b):
        mean = jnp.mean(y, axis=(0, 1, 2))
        var = jnp.var(y, axis=(0, 1, 2))
        return (y - mean) * jax.lax.rsqrt(var + BN_EPS) * g + b

    in_planes = x.shape[-1]
    planes = params["conv1_w"].shape[0]
    out = jax.nn.relu(bn(conv(x, params["conv1_w"], stride, 1),
                         params["bn1_g"], params["bn1_b"]))
    out = bn(conv(out, params["conv2_w"], 1, 1), params["bn2_g"], params["bn2_b"])
    if stride != 1 or in_planes != planes:
        sc = bn(conv(x, params["conv3_w"], stride, 0), params["bn_sc_g"], params["bn_sc_b"])
    else:
        sc = x
    out = jax.nn.relu(out + sc)
    return jnp.transpose(out, (0, 3, 1, 2))


# --------------------------------- main --------------------------------------------------
if __name__ == "__main__":
    key = jax.random.PRNGKey(0)
    k_x, k_p, k_x2, k_p2 = jax.random.split(key, 4)

    # projection-shortcut case (stride 2, channel change): exercises the fused
    # conv2 + 1x1-shortcut + bn_sc kernels
    in_planes, planes, stride = 4, 8, 2
    x = jax.random.normal(k_x, (2, in_planes, 16, 16), jnp.float32)  # NCHW
    params = init_basic_block_params(k_p, in_planes, planes)
    out = jax.block_until_ready(basic_block_forward(x, params, stride))
    ref = _ref_forward(x, params, stride)
    assert out.shape == (2, planes, 8, 8), out.shape
    assert bool(jnp.all(jnp.isfinite(out)))
    assert bool(jnp.all(out >= 0.0))          # final ReLU
    err = float(jnp.max(jnp.abs(out - ref)) / (jnp.max(jnp.abs(ref)) + 1e-6))
    assert err < 0.1, err                     # bf16 conv path vs f32 reference

    # identity-shortcut case (stride 1, same channels)
    x2 = jax.random.normal(k_x2, (2, planes, 16, 16), jnp.float32)
    params2 = init_basic_block_params(k_p2, planes, planes)
    out2 = jax.block_until_ready(basic_block_forward(x2, params2, 1))
    ref2 = _ref_forward(x2, params2, 1)
    assert out2.shape == (2, planes, 16, 16), out2.shape
    assert bool(jnp.all(jnp.isfinite(out2)))
    assert bool(jnp.all(out2 >= 0.0))
    err2 = float(jnp.max(jnp.abs(out2 - ref2)) / (jnp.max(jnp.abs(ref2)) + 1e-6))
    assert err2 < 0.1, err2

    print("KERNEL_OK")
</pallas_src>

<mosaic_0001>
module attributes {stable_mosaic.version = 11 : i64} {
  func.func @_matmul_stats_kernel(%arg0: i32, %arg1: memref<64x128xbf16, #tpu.memory_space<vmem>>, %arg2: memref<128x128xbf16, #tpu.memory_space<vmem>>, %arg3: memref<64x128xbf16, #tpu.memory_space<vmem>>, %arg4: memref<1x8x128xf32, #tpu.memory_space<vmem>>) attributes {dimension_semantics = [#tpu.dimension_semantics<parallel>], iteration_bounds = array<i64: 2>, scalar_prefetch = 0 : i64, scratch_operands = 0 : i64, tpu.core_type = #tpu.core_type<tc>, window_params = [{transform_indices = @transform_0, window_bounds = array<i64: 64, 128>}, {pipeline_mode = #tpu.pipeline_mode<synchronous>, transform_indices = @transform_1, window_bounds = array<i64: 128, 128>}, {transform_indices = @transform_2, window_bounds = array<i64: 64, 128>}, {transform_indices = @transform_3, window_bounds = array<i64: 1, 8, 128>}]} {
    %c0 = arith.constant 0 : index
    %c0_0 = arith.constant 0 : index
    %0 = vector.load %arg1[%c0, %c0_0] : memref<64x128xbf16, #tpu.memory_space<vmem>>, vector<64x128xbf16>
    %c0_1 = arith.constant 0 : index
    %c0_2 = arith.constant 0 : index
    %1 = vector.load %arg2[%c0_1, %c0_2] : memref<128x128xbf16, #tpu.memory_space<vmem>>, vector<128x128xbf16>
    %cst = arith.constant dense<0.000000e+00> : vector<64x128xf32>
    %2 = tpu.matmul %0, %1, %cst {dimension_numbers = #tpu.dot_dimension_numbers<[1], [0], [0], [1], [0, 0, 1, 1], [], []>} : vector<64x128xbf16>, vector<128x128xbf16>, vector<64x128xf32> -> vector<64x128xf32>
    %3 = arith.truncf %2 : vector<64x128xf32> to vector<64x128xbf16>
    %c0_3 = arith.constant 0 : index
    %c0_4 = arith.constant 0 : index
    %4 = vector.load %arg3[%c0_3, %c0_4] : memref<64x128xbf16, #tpu.memory_space<vmem>>, vector<64x128xbf16>
    tpu.vector_store %arg3[%c0_3, %c0_4], %3 {strides = array<i32>} : memref<64x128xbf16, #tpu.memory_space<vmem>>, vector<64x128xbf16>,
    %cst_5 = arith.constant dense<0.000000e+00> : vector<128xf32>
    %5 = vector.multi_reduction <add>, %2, %cst_5 [0] : vector<64x128xf32> to vector<128xf32>
    %6 = vector.shape_cast %5 : vector<128xf32> to vector<1x128xf32>
    %7 = arith.mulf %2, %2 : vector<64x128xf32>
    %cst_6 = arith.constant dense<0.000000e+00> : vector<128xf32>
    %8 = vector.multi_reduction <add>, %7, %cst_6 [0] : vector<64x128xf32> to vector<128xf32>
    %9 = vector.shape_cast %8 : vector<128xf32> to vector<1x128xf32>
    %cst_7 = arith.constant 0.000000e+00 : f32
    %10 = vector.broadcast %cst_7 : f32 to vector<6x128xf32>
    %11 = tpu.concatenate %6, %9, %10 in 0 : vector<1x128xf32>, vector<1x128xf32>, vector<6x128xf32> -> vector<8x128xf32>
    %12 = vector.shape_cast %11 : vector<8x128xf32> to vector<1x8x128xf32>
    %c0_8 = arith.constant 0 : index
    %c0_9 = arith.constant 0 : index
    %c0_10 = arith.constant 0 : index
    %13 = vector.load %arg4[%c0_8, %c0_9, %c0_10] : memref<1x8x128xf32, #tpu.memory_space<vmem>>, vector<1x8x128xf32>
    tpu.vector_store %arg4[%c0_8, %c0_9, %c0_10], %12 {strides = array<i32>} : memref<1x8x128xf32, #tpu.memory_space<vmem>>, vector<1x8x128xf32>,
    return
  }
  func.func @transform_0(%arg0: i32) -> (i32, i32) {
    %c0_i32 = arith.constant 0 : i32
    %c0_i32_0 = arith.constant 0 : i32
    return %arg0, %c0_i32 : i32, i32
  }
  func.func @transform_1(%arg0: i32) -> (i32, i32) {
    %c0_i32 = arith.constant 0 : i32
    %c0_i32_0 = arith.constant 0 : i32
    %c0_i32_1 = arith.constant 0 : i32
    return %c0_i32, %c0_i32_0 : i32, i32
  }
  func.func @transform_2(%arg0: i32) -> (i32, i32) {
    %c0_i32 = arith.constant 0 : i32
    %c0_i32_0 = arith.constant 0 : i32
    return %arg0, %c0_i32 : i32, i32
  }
  func.func @transform_3(%arg0: i32) -> (i32, i32, i32) {
    %c0_i32 = arith.constant 0 : i32
    %c0_i32_0 = arith.constant 0 : i32
    %c0_i32_1 = arith.constant 0 : i32
    return %arg0, %c0_i32, %c0_i32_0 : i32, i32, i32
  }
}

</mosaic_0001>

<llo_original>
// kernel: tpu_custom_call.1
$region0: #{tpu_custom_call.1}
  #allocation0 [shape = 'u32[]', space=smem, size = 0x4, offset = 0x4, fixed_abs, tag = 'smem constant byte address 0x4 - core index']
  #allocation1 [shape = 'u32[144,128]{1,0:T(1,128)}', space=vmem, size = 0x12000, scoped, tag = 'internal scratch']
  %s0 = inlined_call_operand.hbm [shape: bf16[128,128], index: 0, kind: input, shape index: {}]
  %s1 = inlined_call_operand.hbm [shape: bf16[128,128], index: 1, kind: input, shape index: {}]
  %s2 = inlined_call_operand.hbm [shape: bf16[128,128], index: 2, kind: output, shape index: {0}]
  %s3 = inlined_call_operand.hbm [shape: f32[2,8,128], index: 3, kind: output, shape index: {1}]
  %4 = xla_tuple %s2, %s3
  %s5 = sld [smem:[#allocation0]]
  $region57: #{tpu_custom_call.1} parent=0
    _
  %s7 = ssub.s32 1, %s5
  %s8 = scalar_select 0, %s7, %s5
  $region1: #{tpu_custom_call.1} parent=0
    #allocation2 [shape = 'u8[32768]{0}', space=vmem, size = 0x8000, scoped, tag = 'input window, operand 0']
    #allocation3 [shape = 's32[2]{0}', space=sflag, size = 0x8, scoped, tag = 'scoped memory for tpu_custom_call.1']
    #allocation4 [shape = 's32[2]{0}', space=sflag, size = 0x8, scoped, tag = 'scoped memory for tpu_custom_call.1']
    #allocation5 [shape = 'u8[32768]{0}', space=vmem, size = 0x8000, scoped, tag = 'input window, operand 1, single buffered']
    #allocation6 [shape = 's32[1]{0}', space=sflag, size = 0x4, scoped, tag = 'scoped memory for tpu_custom_call.1']
    #allocation7 [shape = 'u8[32768]{0}', space=vmem, size = 0x8000, scoped, tag = 'output window, operand 0']
    #allocation8 [shape = 'u8[8192]{0}', space=vmem, size = 0x2000, scoped, tag = 'output window, operand 1']
    #allocation9 [shape = 's32[2]{0}', space=sflag, size = 0x8, scoped, tag = 'scoped memory for tpu_custom_call.1']
    %9 = vsyncpa [#allocation3], 0
    %s10 = scalar_lea.sflag [#allocation3], 1
    %11 = vsyncpa %s10, 0
    %12 = vsyncpa [#allocation6], 0
    %13 = vsyncpa [#allocation4], 0
    %s14 = scalar_lea.sflag [#allocation4], 1
    %15 = vsyncpa %s14, 0
    %16 = vsyncpa [#allocation9], 0
    %s17 = scalar_lea.sflag [#allocation9], 1
    %18 = vsyncpa %s17, 0
    loop: start=0, step=1, limit=4
    $region2: #{tpu_custom_call.1} parent=1 // loop_pre_header
      _
    $region3: #{tpu_custom_call.1} parent=1 // loop_header
      %s20 = sphi 0, %s24
      %p21 = scmp.ge.s32.totalorder %s20, 4
      %s30 = sphi 0, %s32
      %s33 = sphi 0, %s30
      %s34 = sphi 0, %s33
      %s50 = sphi 0, %s34
      %s54 = sphi 0, %s54
      %s56 = sphi 0, %s54
      %s57 = sphi 0, %s56
      %s71 = sphi 0, %s57
      %s77 = sphi 0, %s79
      %s80 = sphi 0, %s77
      %s81 = sphi 0, %s80
      %s97 = sphi 0, %s81
      %s103 = sphi 0, %s105
      %s106 = sphi 0, %s103
      %s107 = sphi 0, %s106
      %s123 = sphi 0, %s107
    $region4: #{tpu_custom_call.1} parent=1 // loop_header_branch
      %23 = sbr.rel (%p21) target = $region8
    $region5: #{tpu_custom_call.1} parent=1 // loop_body
      %s25 = ssub.s32 %s20, 1
      %s26 = ssub.s32 %s20, 2
      %s27 = sadd.s32 %s20, 1
      %s28 = ssub.s32 %s20, %s27
      %p29 = scmp.eq.s32.totalorder %s28, 0
      %s31 = sadd.s32 %s30, 1
      %s32 = scalar_select %p29, %s30, %s31
      %p35 = pneg %p29
      %p36 = scmp.eq.s32.totalorder %s20, 1
      %p37 = por %p35, %p36
      %p38 = scmp.ne.s32.totalorder %s30, %s33
      %p39 = scmp.eq.s32.totalorder %s20, 0
      %p40 = por %p38, %p39
      %p41 = scmp.ne.s32.totalorder %s30, %s33
      %p42 = scmp.eq.s32.totalorder %s25, 1
      %p43 = por %p41, %p42
      %p44 = scmp.ne.s32.totalorder %s33, %s34
      %p45 = scmp.eq.s32.totalorder %s25, 0
      %p46 = por %p44, %p45
      %p47 = scmp.ne.s32.totalorder %s33, %s34
      %p48 = scmp.eq.s32.totalorder %s26, 1
      %p49 = por %p47, %p48
      %p51 = scmp.ne.s32.totalorder %s34, %s50
      %p52 = scmp.eq.s32.totalorder %s26, 0
      %p53 = por %p51, %p52
      %s55 = sadd.s32 %s54, 1
      %p58 = scmp.eq.s32.totalorder %s20, 1
      %p59 = scmp.ne.s32.totalorder %s54, %s56
      %p60 = scmp.eq.s32.totalorder %s20, 0
      %p61 = por %p59, %p60
      %p62 = scmp.ne.s32.totalorder %s54, %s56
      %p63 = scmp.eq.s32.totalorder %s25, 1
      %p64 = por %p62, %p63
      %p65 = scmp.ne.s32.totalorder %s56, %s57
      %p66 = scmp.eq.s32.totalorder %s25, 0
      %p67 = por %p65, %p66
      %p68 = scmp.ne.s32.totalorder %s56, %s57
      %p69 = scmp.eq.s32.totalorder %s26, 1
      %p70 = por %p68, %p69
      %p72 = scmp.ne.s32.totalorder %s57, %s71
      %p73 = scmp.eq.s32.totalorder %s26, 0
      %p74 = por %p72, %p73
      %s75 = ssub.s32 %s20, %s27
      %p76 = scmp.eq.s32.totalorder %s75, 0
      %s78 = sadd.s32 %s77, 1
      %s79 = scalar_select %p76, %s77, %s78
      %p82 = pneg %p76
      %p83 = scmp.eq.s32.totalorder %s20, 1
      %p84 = por %p82, %p83
      %p85 = scmp.ne.s32.totalorder %s77, %s80
      %p86 = scmp.eq.s32.totalorder %s20, 0
      %p87 = por %p85, %p86
      %p88 = scmp.ne.s32.totalorder %s77, %s80
      %p89 = scmp.eq.s32.totalorder %s25, 1
      %p90 = por %p88, %p89
      %p91 = scmp.ne.s32.totalorder %s80, %s81
      %p92 = scmp.eq.s32.totalorder %s25, 0
      %p93 = por %p91, %p92
      %p94 = scmp.ne.s32.totalorder %s80, %s81
      %p95 = scmp.eq.s32.totalorder %s26, 1
      %p96 = por %p94, %p95
      %p98 = scmp.ne.s32.totalorder %s81, %s97
      %p99 = scmp.eq.s32.totalorder %s26, 0
      %p100 = por %p98, %p99
      %s101 = ssub.s32 %s20, %s27
      %p102 = scmp.eq.s32.totalorder %s101, 0
      %s104 = sadd.s32 %s103, 1
      %s105 = scalar_select %p102, %s103, %s104
      %p108 = pneg %p102
      %p109 = scmp.eq.s32.totalorder %s20, 1
      %p110 = por %p108, %p109
      %p111 = scmp.ne.s32.totalorder %s103, %s106
      %p112 = scmp.eq.s32.totalorder %s20, 0
      %p113 = por %p111, %p112
      %p114 = scmp.ne.s32.totalorder %s103, %s106
      %p115 = scmp.eq.s32.totalorder %s25, 1
      %p116 = por %p114, %p115
      %p117 = scmp.ne.s32.totalorder %s106, %s107
      %p118 = scmp.eq.s32.totalorder %s25, 0
      %p119 = por %p117, %p118
      %p120 = scmp.ne.s32.totalorder %s106, %s107
      %p121 = scmp.eq.s32.totalorder %s26, 1
      %p122 = por %p120, %p121
      %p124 = scmp.ne.s32.totalorder %s107, %s123
      %p125 = scmp.eq.s32.totalorder %s26, 0
      %p126 = por %p124, %p125
      %p127 = scmp.le.s32.totalorder 1, %s20
      %p128 = scmp.lt.s32.totalorder %s20, 3
      %p129 = pnand %p127, %p128
      %p130 = pneg %p129
      // Predicated region
      $region9: #{tpu_custom_call.1} parent=5 // pred_check
        _
      $region10: #{tpu_custom_call.1} parent=5 // pred_check_branch
        %132 = sbr.rel (%p129) target = $region12
      $region11: #{tpu_custom_call.1} parent=5 // pred_region
        %s133 = ssub.s32 %s20, 1
        // Predicated region
        $region13: #{tpu_custom_call.1} parent=11 // pred_check
          %p134 = pneg %p67
        $region14: #{tpu_custom_call.1} parent=11 // pred_check_branch
          %136 = sbr.rel (%p134) target = $region16
        $region15: #{tpu_custom_call.1} parent=11 // pred_region
          %s138 = ssub.s32 1024, 1024
          %139 = vsyncadd [#allocation6], %s138
          %s140 = sshll.u32 [#allocation5], 4
          %s141 = int_to_ptr.vmem [resolvable:$true] %s140
          %146 = dma.hbm_to_vmem [thread:$0]  %s1, 1024, %s141, [#allocation6], 64, 64, 4
        $region16: #{tpu_custom_call.1} parent=11 // pred_fallthru
          _
      $region12: #{tpu_custom_call.1} parent=5 // pred_fallthru
        _
      %p147 = scmp.lt.s32.totalorder %s20, 2
      // Predicated region
      $region17: #{tpu_custom_call.1} parent=5 // pred_check
        %p148 = pneg %p147
      $region18: #{tpu_custom_call.1} parent=5 // pred_check_branch
        %150 = sbr.rel (%p148) target = $region20
      $region19: #{tpu_custom_call.1} parent=5 // pred_region
        // Predicated region
        $region21: #{tpu_custom_call.1} parent=19 // pred_check
          %p151 = pneg %p40
        $region22: #{tpu_custom_call.1} parent=19 // pred_check_branch
          %153 = sbr.rel (%p151) target = $region24
        $region23: #{tpu_custom_call.1} parent=19 // pred_region
          %s154 = sand.u32 %s30, 1
          %s155 = scalar_lea.sflag [#allocation3], %s154
          %s156 = sand.u32 %s30, 1
          %s157 = smul.addr %s156, 32
          %s158 = scalar_lea.vmem [#allocation2], %s157
          %s159 = smul.u32 8, %s20
          %s161 = ssub.s32 512, 512
          %162 = vsyncadd %s155, %s161
          %s163 = smul.addr %s159, 64
          %s164 = scalar_lea.hbm %s0, %s163
          %s165 = sshll.u32 %s158, 4
          %s166 = int_to_ptr.vmem [resolvable:$true] %s165
          %171 = dma.hbm_to_vmem [thread:$0]  %s164, 512, %s166, %s155, 64, 64, 4
        $region24: #{tpu_custom_call.1} parent=19 // pred_fallthru
          _
      $region20: #{tpu_custom_call.1} parent=5 // pred_fallthru
        _
      %p172 = scmp.le.s32.totalorder 1, %s20
      %p173 = scmp.lt.s32.totalorder %s20, 3
      %p174 = pnand %p172, %p173
      %p175 = pneg %p174
      // Predicated region
      $region25: #{tpu_custom_call.1} parent=5 // pred_check
        _
      $region26: #{tpu_custom_call.1} parent=5 // pred_check_branch
        %177 = sbr.rel (%p174) target = $region28
      $region27: #{tpu_custom_call.1} parent=5 // pred_region
        %s178 = ssub.s32 %s20, 1
        %s179 = sand.u32 %s33, 1
        %s180 = scalar_lea.sflag [#allocation3], %s179
        %s181 = sand.u32 %s33, 1
        %s182 = smul.addr %s181, 32
        %s183 = scalar_lea.vmem [#allocation2], %s182
        // Predicated region
        $region29: #{tpu_custom_call.1} parent=27 // pred_check
          %p184 = pneg %p46
        $region30: #{tpu_custom_call.1} parent=27 // pred_check_branch
          %186 = sbr.rel (%p184) target = $region32
        $region31: #{tpu_custom_call.1} parent=27 // pred_region
          %187 = dma.done %s180, 512
        $region32: #{tpu_custom_call.1} parent=27 // pred_fallthru
          _
        // Predicated region
        $region33: #{tpu_custom_call.1} parent=27 // pred_check
          %p188 = pneg %p67
        $region34: #{tpu_custom_call.1} parent=27 // pred_check_branch
          %190 = sbr.rel (%p188) target = $region36
        $region35: #{tpu_custom_call.1} parent=27 // pred_region
          %191 = dma.done [#allocation6], 1024
        $region36: #{tpu_custom_call.1} parent=27 // pred_fallthru
          _
        %s192 = sand.u32 %s33, 1
        %s193 = scalar_lea.sflag [#allocation3], %s192
        %s194 = sand.u32 %s33, 1
        %s195 = smul.addr %s194, 32
        %s196 = scalar_lea.vmem [#allocation2], %s195
        %p197 = pneg %p46
        %p198 = pneg %p43
        %p199 = pneg %p67
        %p200 = pneg %p64
        %p201 = pneg %p93
        %p202 = pneg %p90
        %s203 = sand.u32 %s80, 1
        %s204 = scalar_lea.sflag [#allocation4], %s203
        %s205 = sand.u32 %s80, 1
        %s206 = smul.addr %s205, 32
        %s207 = scalar_lea.vmem [#allocation7], %s206
        %p208 = pneg %p119
        %p209 = pneg %p116
        %s210 = sand.u32 %s106, 1
        %s211 = scalar_lea.sflag [#allocation9], %s210
        %s212 = sand.u32 %s106, 1
        %s213 = smul.addr %s212, 8
        %s214 = scalar_lea.vmem [#allocation8], %s213
        %s215 = smul.u32 8, %s25
        %s216 = smul.u32 8, %s25
        %v218 = vld [vmem:[%s183] sm:$0xf]
        %v219 = vld [vmem:[%s183 + $0x4] sm:$0xf]
        %v220 = vld [vmem:[%s183 + $0x8] sm:$0xf]
        %v221 = vld [vmem:[%s183 + $0xc] sm:$0xf]
        %v222 = vld [vmem:[%s183 + $0x10] sm:$0xf]
        %v223 = vld [vmem:[%s183 + $0x14] sm:$0xf]
        %v224 = vld [vmem:[%s183 + $0x18] sm:$0xf]
        %v225 = vld [vmem:[%s183 + $0x1c] sm:$0xf]
        %v226 = vld [vmem:[#allocation5] sm:$0xf]
        %v227 = vld [vmem:[#allocation5 + $0x4] sm:$0xf]
        %v228 = vld [vmem:[#allocation5 + $0x8] sm:$0xf]
        %v229 = vld [vmem:[#allocation5 + $0xc] sm:$0xf]
        %v230 = vld [vmem:[#allocation5 + $0x10] sm:$0xf]
        %v231 = vld [vmem:[#allocation5 + $0x14] sm:$0xf]
        %v232 = vld [vmem:[#allocation5 + $0x18] sm:$0xf]
        %v233 = vld [vmem:[#allocation5 + $0x1c] sm:$0xf]
        %v234 = vld [vmem:[#allocation5 + $0x20] sm:$0xf]
        %v235 = vld [vmem:[#allocation5 + $0x24] sm:$0xf]
        %v236 = vld [vmem:[#allocation5 + $0x28] sm:$0xf]
        %v237 = vld [vmem:[#allocation5 + $0x2c] sm:$0xf]
        %v238 = vld [vmem:[#allocation5 + $0x30] sm:$0xf]
        %v239 = vld [vmem:[#allocation5 + $0x34] sm:$0xf]
        %v240 = vld [vmem:[#allocation5 + $0x38] sm:$0xf]
        %v241 = vld [vmem:[#allocation5 + $0x3c] sm:$0xf]
        %v250 = vunpack.c.l.b16 %v218
        %v251 = vunpack.c.l.b16 %v219
        %v252 = vunpack.c.l.b16 %v220
        %v253 = vunpack.c.l.b16 %v221
        %v254 = vunpack.c.l.b16 %v222
        %v255 = vunpack.c.l.b16 %v223
        %v256 = vunpack.c.l.b16 %v224
        %v257 = vunpack.c.l.b16 %v225
        %v258 = vpack.c.b16 %v251, %v250
        %v259 = vpack.c.b16 %v253, %v252
        %v260 = vpack.c.b16 %v255, %v254
        %v261 = vpack.c.b16 %v257, %v256
        %v282 = vunpack.c.l.b16 %v226
        %v283 = vunpack.c.l.b16 %v227
        %v284 = vunpack.c.l.b16 %v228
        %v285 = vunpack.c.l.b16 %v229
        %v286 = vunpack.c.l.b16 %v230
        %v287 = vunpack.c.l.b16 %v231
        %v288 = vunpack.c.l.b16 %v232
        %v289 = vunpack.c.l.b16 %v233
        %v290 = vunpack.c.l.b16 %v234
        %v291 = vunpack.c.l.b16 %v235
        %v292 = vunpack.c.l.b16 %v236
        %v293 = vunpack.c.l.b16 %v237
        %v294 = vunpack.c.l.b16 %v238
        %v295 = vunpack.c.l.b16 %v239
        %v296 = vunpack.c.l.b16 %v240
        %v297 = vunpack.c.l.b16 %v241
        %v298 = vpack.c.b16 %v283, %v282
        %v299 = vpack.c.b16 %v285, %v284
        %v300 = vpack.c.b16 %v287, %v286
        %v301 = vpack.c.b16 %v289, %v288
        %v302 = vpack.c.b16 %v291, %v290
        %v303 = vpack.c.b16 %v293, %v292
        %v304 = vpack.c.b16 %v295, %v294
        %v305 = vpack.c.b16 %v297, %v296
        %314 = vmatprep.subr.bf16.mxu0 0
        %315 = vmatpush1.bf16.msra.mxu0 %v298
        %316 = vmatprep.subr.bf16.mxu0 0
        %317 = vmatpush1.bf16.msra.mxu0 %v299
        %318 = vmatprep.subr.bf16.mxu0 0
        %319 = vmatpush1.bf16.msra.mxu0 %v300
        %320 = vmatprep.subr.bf16.mxu0 0
        %321 = vmatpush1.bf16.msra.mxu0 %v301
        %322 = vmatprep.subr.bf16.mxu0 0
        %323 = vmatpush1.bf16.msra.mxu0 %v302
        %324 = vmatprep.subr.bf16.mxu0 0
        %325 = vmatpush1.bf16.msra.mxu0 %v303
        %326 = vmatprep.subr.bf16.mxu0 0
        %327 = vmatpush1.bf16.msra.mxu0 %v304
        %328 = vmatprep.subr.bf16.mxu0 0
        %329 = vmatpush1.bf16.msra.mxu0 %v305
        %330 = vmatprep.subr.bf16.mxu0 0
        %331 = vmatpush1.bf16.msra.mxu0 0
        %332 = vmatprep.subr.bf16.mxu0 0
        %333 = vmatpush1.bf16.msra.mxu0 0
        %334 = vmatprep.subr.bf16.mxu0 0
        %335 = vmatpush1.bf16.msra.mxu0 0
        %336 = vmatprep.subr.bf16.mxu0 0
        %337 = vmatpush1.bf16.msra.mxu0 0
        %338 = vmatprep.subr.bf16.mxu0 0
        %339 = vmatpush1.bf16.msra.mxu0 0
        %340 = vmatprep.subr.bf16.mxu0 0
        %341 = vmatpush1.bf16.msra.mxu0 0
        %342 = vmatprep.subr.bf16.mxu0 0
        %343 = vmatpush1.bf16.msra.mxu0 0
        %344 = vmatprep.subr.bf16.mxu0 0
        %345 = vmatpush1.bf16.msra.mxu0 0
        %346 = vmatprep.mubr.bf16.mxu0 0
        %347 = vmatmul.mubr.bf16.gmra.mrb[0].mxu0 %v258
        %v348 = vpop.f32.mrb[0].mxu0
        %v349 = vadd.f32 0.0, %v348
        %v350 = vpop.f32.mrb[0].mxu0
        %v351 = vpop.f32.mrb[0].mxu0
        %v352 = vadd.f32 0.0, %v351
        %v353 = vpop.f32.mrb[0].mxu0
        %354 = vmatprep.mubr.bf16.mxu0 0
        %355 = vmatmul.mubr.bf16.gmra.mrb[0].mxu0 %v259
        %v356 = vpop.f32.mrb[0].mxu0
        %v357 = vadd.f32 0.0, %v356
        %v358 = vpop.f32.mrb[0].mxu0
        %v359 = vpop.f32.mrb[0].mxu0
        %v360 = vadd.f32 0.0, %v359
        %v361 = vpop.f32.mrb[0].mxu0
        %362 = vmatprep.mubr.bf16.mxu0 0
        %363 = vmatmul.mubr.bf16.gmra.mrb[0].mxu0 %v260
        %v364 = vpop.f32.mrb[0].mxu0
        %v365 = vadd.f32 0.0, %v364
        %v366 = vpop.f32.mrb[0].mxu0
        %v367 = vpop.f32.mrb[0].mxu0
        %v368 = vadd.f32 0.0, %v367
        %v369 = vpop.f32.mrb[0].mxu0
        %370 = vmatprep.mubr.bf16.mxu0 0
        %371 = vmatmul.mubr.bf16.gmra.mrb[0].mxu0 %v261
        %v372 = vpop.f32.mrb[0].mxu0
        %v373 = vadd.f32 0.0, %v372
        %v374 = vpop.f32.mrb[0].mxu0
        %v375 = vpop.f32.mrb[0].mxu0
        %v376 = vadd.f32 0.0, %v375
        %v377 = vpop.f32.mrb[0].mxu0
        %378 = vdwg.mxu0
        %v379 = vpack.c.bf16 %v352, %v349
        %v380 = vpack.c.bf16 %v360, %v357
        %v381 = vpack.c.bf16 %v368, %v365
        %v382 = vpack.c.bf16 %v376, %v373
        %v387 = vunpack.c.l.b16 %v379
        %v388 = vunpack.c.h.b16 %v379
        %v389 = vunpack.c.l.b16 %v380
        %v390 = vunpack.c.h.b16 %v380
        %v391 = vunpack.c.l.b16 %v381
        %v392 = vunpack.c.h.b16 %v381
        %v393 = vunpack.c.l.b16 %v382
        %v394 = vunpack.c.h.b16 %v382
        %v395 = vpack.c.b16 %v387, %v387
        %v396 = vpack.c.b16 %v388, %v388
        %v397 = vpack.c.b16 %v389, %v389
        %v398 = vpack.c.b16 %v390, %v390
        %v399 = vpack.c.b16 %v391, %v391
        %v400 = vpack.c.b16 %v392, %v392
        %v401 = vpack.c.b16 %v393, %v393
        %v402 = vpack.c.b16 %v394, %v394
        %411 = vst [vmem:[%s207] sm:$0xf] %v395
        %412 = vst [vmem:[%s207 + $0x4] sm:$0xf] %v396
        %413 = vst [vmem:[%s207 + $0x8] sm:$0xf] %v397
        %414 = vst [vmem:[%s207 + $0xc] sm:$0xf] %v398
        %415 = vst [vmem:[%s207 + $0x10] sm:$0xf] %v399
        %416 = vst [vmem:[%s207 + $0x14] sm:$0xf] %v400
        %417 = vst [vmem:[%s207 + $0x18] sm:$0xf] %v401
        %418 = vst [vmem:[%s207 + $0x1c] sm:$0xf] %v402
        %v419 = vadd.f32 %v349, %v352
        %v420 = vadd.f32 %v419, %v357
        %v421 = vadd.f32 %v420, %v360
        %v422 = vadd.f32 %v421, %v365
        %v423 = vadd.f32 %v422, %v368
        %v424 = vadd.f32 %v423, %v373
        %v425 = vadd.f32 %v424, %v376
        %v426 = vrot.slane %v425, 4
        %v427 = vadd.f32 %v425, %v426
        %v428 = vrot.slane %v427, 2
        %v429 = vadd.f32 %v427, %v428
        %v430 = vrot.slane %v429, 1
        %v431 = vadd.f32 %v429, %v430
        %v432 = vmul.f32 %v349, %v349
        %v433 = vmul.f32 %v352, %v352
        %v434 = vmul.f32 %v357, %v357
        %v435 = vmul.f32 %v360, %v360
        %v436 = vmul.f32 %v365, %v365
        %v437 = vmul.f32 %v368, %v368
        %v438 = vmul.f32 %v373, %v373
        %v439 = vmul.f32 %v376, %v376
        %v440 = vadd.f32 %v432, %v433
        %v441 = vadd.f32 %v440, %v434
        %v442 = vadd.f32 %v441, %v435
        %v443 = vadd.f32 %v442, %v436
        %v444 = vadd.f32 %v443, %v437
        %v445 = vadd.f32 %v444, %v438
        %v446 = vadd.f32 %v445, %v439
        %v447 = vrot.slane %v446, 4
        %v448 = vadd.f32 %v446, %v447
        %v449 = vrot.slane %v448, 2
        %v450 = vadd.f32 %v448, %v449
        %v451 = vrot.slane %v450, 1
        %v452 = vadd.f32 %v450, %v451
        %vm453 = vcmask 1040384
        %v454 = vsel %vm453, %v431, %v452
        %vm455 = vcmask 1041408
        %v456 = vsel %vm455, %v454, 0.0
        %457 = vst [vmem:[%s214] sm:$0xff] %v456
        %s458 = sand.u32 %s80, 1
        %s459 = scalar_lea.sflag [#allocation4], %s458
        %s460 = sand.u32 %s80, 1
        %s461 = smul.addr %s460, 32
        %s462 = scalar_lea.vmem [#allocation7], %s461
        %s463 = sand.u32 %s106, 1
        %s464 = scalar_lea.sflag [#allocation9], %s463
        %s465 = sand.u32 %s106, 1
        %s466 = smul.addr %s465, 8
        %s467 = scalar_lea.vmem [#allocation8], %s466
        // Predicated region
        $region37: #{tpu_custom_call.1} parent=27 // pred_check
          %p468 = pneg %p90
        $region38: #{tpu_custom_call.1} parent=27 // pred_check_branch
          %470 = sbr.rel (%p468) target = $region40
        $region39: #{tpu_custom_call.1} parent=27 // pred_region
          %s471 = smul.u32 8, %s25
          %s473 = ssub.s32 512, 512
          %474 = vsyncadd %s459, %s473
          %s475 = smul.addr %s471, 64
          %s476 = scalar_lea.hbm %s2, %s475
          %s477 = sshll.u32 %s462, 4
          %s478 = int_to_ptr.vmem [resolvable:$true] %s477
          %483 = dma.vmem_to_hbm [thread:$0]  %s478, 512, %s476, %s459, 64, 64, 4
        $region40: #{tpu_custom_call.1} parent=27 // pred_fallthru
          _
        // Predicated region
        $region41: #{tpu_custom_call.1} parent=27 // pred_check
          %p484 = pneg %p116
        $region42: #{tpu_custom_call.1} parent=27 // pred_check_branch
          %486 = sbr.rel (%p484) target = $region44
        $region43: #{tpu_custom_call.1} parent=27 // pred_region
          %s488 = ssub.s32 128, 128
          %489 = vsyncadd %s464, %s488
          %s490 = smul.addr %s25, 128
          %s491 = scalar_lea.hbm %s3, %s490
          %s493 = sshll.u32 %s467, 4
          %s494 = int_to_ptr.vmem [resolvable:$true] %s493
          %496 = dma.vmem_to_hbm [thread:$0]  %s494, 128, %s491, %s464
        $region44: #{tpu_custom_call.1} parent=27 // pred_fallthru
          _
      $region28: #{tpu_custom_call.1} parent=5 // pred_fallthru
        _
      %p497 = scmp.le.s32.totalorder 2, %s20
      // Predicated region
      $region45: #{tpu_custom_call.1} parent=5 // pred_check
        %p498 = pneg %p497
      $region46: #{tpu_custom_call.1} parent=5 // pred_check_branch
        %500 = sbr.rel (%p498) target = $region48
      $region47: #{tpu_custom_call.1} parent=5 // pred_region
        %s501 = ssub.s32 %s20, 2
        // Predicated region
        $region49: #{tpu_custom_call.1} parent=47 // pred_check
          %p502 = pneg %p96
        $region50: #{tpu_custom_call.1} parent=47 // pred_check_branch
          %504 = sbr.rel (%p502) target = $region52
        $region51: #{tpu_custom_call.1} parent=47 // pred_region
          %s505 = sand.u32 %s81, 1
          %s506 = scalar_lea.sflag [#allocation4], %s505
          %s507 = sand.u32 %s81, 1
          %s508 = smul.addr %s507, 32
          %s509 = scalar_lea.vmem [#allocation7], %s508
          %510 = dma.done %s506, 512
        $region52: #{tpu_custom_call.1} parent=47 // pred_fallthru
          _
        // Predicated region
        $region53: #{tpu_custom_call.1} parent=47 // pred_check
          %p511 = pneg %p122
        $region54: #{tpu_custom_call.1} parent=47 // pred_check_branch
          %513 = sbr.rel (%p511) target = $region56
        $region55: #{tpu_custom_call.1} parent=47 // pred_region
          %s514 = sand.u32 %s107, 1
          %s515 = scalar_lea.sflag [#allocation9], %s514
          %s516 = sand.u32 %s107, 1
          %s517 = smul.addr %s516, 8
          %s518 = scalar_lea.vmem [#allocation8], %s517
          %519 = dma.done %s515, 128
        $region56: #{tpu_custom_call.1} parent=47 // pred_fallthru
          _
      $region48: #{tpu_custom_call.1} parent=5 // pred_fallthru
        _
    $region6: #{tpu_custom_call.1} parent=1 // loop_footer
      %s24 = sadd.s32 1, %s20
    $region7: #{tpu_custom_call.1} parent=1 // loop_footer_branch
      %19 = sbr.rel target = $region3
    $region8: #{tpu_custom_call.1} parent=1 // loop_exit
      _
    %520 = vsyncpa [#allocation3], 1
    %s521 = scalar_lea.sflag [#allocation3], 1
    %522 = vsyncpa %s521, 1
    %523 = vsyncpa [#allocation6], 1
    %524 = vsyncpa [#allocation4], 1
    %s525 = scalar_lea.sflag [#allocation4], 1
    %526 = vsyncpa %s525, 1
    %527 = vsyncpa [#allocation9], 1
    %s528 = scalar_lea.sflag [#allocation9], 1
    %529 = vsyncpa %s528, 1

</llo_original>
